<compile_context>
chip_gen: v6e
topology: v6e:2x2x1
jax: 0.10.0
libtpu: 0.0.40
codegen_flags: <defaults>
</compile_context>

<pallas_src>
import functools

import jax
import jax.numpy as jnp
from jax.experimental import pallas as pl
from jax.experimental.pallas import tpu as pltpu

_WIDTHS = (4096, 2048, 1024, 512, 256, 128)   # lane-dense slab widths (x128)
_SUBLANE = {8: 8, 4: 8, 2: 16, 1: 32}         # min sublane tile per itemsize
_COLBIAS_MAX_BYTES = 256 * 1024               # cap for the resident (1, K) bias tile


@functools.lru_cache(maxsize=None)
def _generation_budget():
    """(target block bytes per buffer, vmem_limit_bytes), gated on VMEM capacity.

    v5e/v6e have 128 MiB VMEM -> bigger blocks amortize the ~0.35us/step cost;
    v7x has 64 MiB VMEM -> keep blocks small and the scoped limit <= ~40 MiB.
    """
    try:
        vmem = int(getattr(pltpu.get_tpu_info(), "vmem_capacity_bytes", 0) or 0)
    except Exception:
        vmem = 0
    if vmem >= 100 * 1024 * 1024:              # v5e / v6e
        return 6 * 1024 * 1024, 64 * 1024 * 1024
    return 3 * 1024 * 1024, 40 * 1024 * 1024   # v7x or unknown: conservative


def _sublane(itemsizes):
    return max(_SUBLANE.get(int(s), 8) for s in itemsizes)


def _block_rows(rows, width, itemsizes, target_bytes):
    """Rows per block: ~target_bytes/buffer, sublane aligned, and >=2 grid steps
    for mid-size slabs so v7x megacore has work for both TensorCores."""
    sub = _sublane(itemsizes)
    row_bytes = max(int(s) for s in itemsizes) * width
    target = max(sub, (target_bytes // max(row_bytes, 1)) // sub * sub)
    if rows <= target:
        if rows > sub and rows * row_bytes >= (1 << 20):
            half = -(-((rows + 1) // 2) // sub) * sub    # ceil(rows/2) -> sublane mult
            if half < rows:
                return half
        return rows
    return target


# ----------------------------------------------------------------------- kernels
def _add_kernel(x_ref, y_ref, o_ref):
    # Covers same-shape tensors, the (block_rows, 1) per-row bias column and the
    # resident (1, K) bias row (jnp broadcasting inside VMEM).  Dtype promotion
    # is done per tile on the VPU, not as a wrapper-side HBM pass.
    o_ref[...] = x_ref[...].astype(o_ref.dtype) + y_ref[...].astype(o_ref.dtype)


def _add_const_kernel(x_ref, o_ref, *, const):
    # y is a python literal -> folded as a compile-time constant.
    # TODO(synk): python ints outside int32 range will not promote to int64 like
    # torch does (TPU default is 32-bit).
    o_ref[...] = x_ref[...].astype(o_ref.dtype) + jnp.asarray(const, o_ref.dtype)


def _add_smem_scalar_kernel(x_ref, s_ref, o_ref):
    # y is a size-1 tensor living in SMEM (widened to 32-bit) -- no O(N) broadcast.
    o_ref[...] = x_ref[...].astype(o_ref.dtype) + s_ref[0].astype(o_ref.dtype)


# ----------------------------------------------------------------------- wrapper
def pallas_add(x, y, *, donate_x: bool = False):
    """Equivalent of AddFunctional.forward: torch.add(x, y).

    `y` may be a jnp array (broadcastable against x) or a python int/float.
    """
    x = jnp.asarray(x)
    y_is_py_scalar = isinstance(y, (int, float)) and not isinstance(y, bool)

    x_was_broadcast = False
    operands_swapped = False
    bias_col = None        # (rows, 1) per-row bias (y constant over each width run)
    bias_row = None        # (1, K) trailing bias, reused by every block
    width = None

    if y_is_py_scalar:
        # TODO(synk): jnp weak-type promotion can differ from torch for
        # int-tensor + python-float corner cases.
        out_dtype = jnp.result_type(x, y)
        out_shape = tuple(int(d) for d in x.shape)
        y_mode, y_payload = "const", y
    else:
        y = jnp.asarray(y)
        out_dtype = jnp.result_type(x.dtype, y.dtype)
        out_shape = tuple(int(d) for d in jnp.broadcast_shapes(x.shape, y.shape))
        x_full = tuple(x.shape) == out_shape
        y_full = tuple(y.shape) == out_shape
        if not x_full and y_full:
            x, y = y, x                  # add is commutative: keep big operand as x
            x_full, y_full = y_full, x_full
            operands_swapped = True
        if not x_full:
            # Both operands broadcast (e.g. (4,1)+(1,4)) -- rare.
            # TODO(synk): materializes x; could be a 2-D outer broadcast in-kernel.
            x = jnp.broadcast_to(x, out_shape)
            x_was_broadcast = True
        if int(y.size) == 1:
            smem_dtype = (jnp.float32 if jnp.issubdtype(y.dtype, jnp.floating)
                          else jnp.int32)
            y_mode, y_payload = "smem", y.reshape(1).astype(smem_dtype)
        elif y_full:
            y_mode, y_payload = "tensor", y
        else:
            y_mode, y_payload = "bcast", y

    n = 1
    for d in out_shape:
        n *= d
    if n == 0:
        return jnp.zeros(out_shape, out_dtype)

    target_block_bytes, vmem_limit = _generation_budget()
    cparams = pltpu.CompilerParams(
        dimension_semantics=("parallel",),      # shard grid steps across TCs on v7x
        vmem_limit_bytes=vmem_limit,
    )

    # Broadcast-style y: keep it small and broadcast in-kernel when the pattern
    # lines up with a lane-dense slab; otherwise fall back to materializing.
    if y_mode == "bcast":
        y_aligned = (1,) * (len(out_shape) - y.ndim) + tuple(int(d) for d in y.shape)
        p = len(out_shape)
        while p > 0 and y_aligned[p - 1] == 1:
            p -= 1
        T = 1                                   # y is constant over trailing T elems
        for d in out_shape[p:]:
            T *= d
        w_t = next((w for w in _WIDTHS if T % w == 0), None)
        q = 0
        while q < len(out_shape) and y_aligned[q] == 1:
            q += 1
        suffix_match = y_aligned[q:] == out_shape[q:]
        K = int(y.size)
        if w_t is not None:
            # Per-channel style bias: one bias value per slab row (O(n/width) data).
            width = w_t
            rows = n // width
            lead = jnp.broadcast_to(
                y.reshape(y_aligned),
                out_shape[:p] + (1,) * (len(out_shape) - p)).reshape(-1)
            bias_col = jnp.repeat(lead, T // width).reshape(rows, 1)
        elif (suffix_match and K % 128 == 0
              and K * jnp.dtype(y.dtype).itemsize <= _COLBIAS_MAX_BYTES):
            # Trailing-suffix bias (e.g. per-hidden bias): resident (1, K) tile.
            width = K
            bias_row = y.reshape(1, K)
        else:
            # TODO(synk): general broadcast patterns are still materialized (one
            # extra HBM pass); an in-kernel strided gather would avoid it.
            y_mode, y_payload = "tensor", jnp.broadcast_to(y, out_shape)

    if width is None:
        width = next((w for w in _WIDTHS if n % w == 0), None)

    io_alias = {}
    if (donate_x and not x_was_broadcast and not operands_swapped
            and jnp.dtype(x.dtype) == jnp.dtype(out_dtype)):
        io_alias = {0: 0}          # x is input index 0 in every path below

    # ---------------- aligned: lane-dense 2-D slab -----------------------------
    if width is not None:
        rows = n // width
        xp = x.reshape(rows, width)             # native dtype -- no wrapper astype
        if y_mode == "tensor":
            y_arr = y_payload.reshape(rows, width)
        elif bias_col is not None:
            y_arr = bias_col
        elif bias_row is not None:
            y_arr = bias_row
        else:
            y_arr = None
        itemsizes = [jnp.dtype(x.dtype).itemsize, jnp.dtype(out_dtype).itemsize]
        if y_arr is not None:
            itemsizes.append(jnp.dtype(y_arr.dtype).itemsize)
        br = _block_rows(rows, width, itemsizes, target_block_bytes)
        grid = (pl.cdiv(rows, br),)
        x_spec = pl.BlockSpec((br, width), lambda i: (i, 0))
        out_spec = pl.BlockSpec((br, width), lambda i: (i, 0))
        out_sds = jax.ShapeDtypeStruct((rows, width), out_dtype)

        if y_mode == "const":
            out = pl.pallas_call(
                functools.partial(_add_const_kernel, const=y_payload),
                out_shape=out_sds, grid=grid,
                in_specs=[x_spec], out_specs=out_spec,
                compiler_params=cparams, input_output_aliases=io_alias,
            )(xp)
        elif y_mode == "smem":
            out = pl.pallas_call(
                _add_smem_scalar_kernel,
                out_shape=out_sds, grid=grid,
                in_specs=[x_spec,
                          pl.BlockSpec(memory_space=pltpu.MemorySpace.SMEM)],
                out_specs=out_spec,
                compiler_params=cparams, input_output_aliases=io_alias,
            )(xp, y_payload)
        else:
            if bias_col is not None:
                y_spec = pl.BlockSpec((br, 1), lambda i: (i, 0))
            elif bias_row is not None:
                y_spec = pl.BlockSpec((1, width), lambda i: (0, 0))
            else:
                y_spec = pl.BlockSpec((br, width), lambda i: (i, 0))
            out = pl.pallas_call(
                _add_kernel,
                out_shape=out_sds, grid=grid,
                in_specs=[x_spec, y_spec], out_specs=out_spec,
                compiler_params=cparams, input_output_aliases=io_alias,
            )(xp, y_arr)
        return out.reshape(out_shape)

    # ---------------- ragged (numel % 128 != 0): 1-D layout, no pad/un-pad -----
    # Pallas masks the (possibly partial) last block, so there is no wrapper-side
    # jnp.pad / slice and therefore no extra O(N) HBM passes.
    xf = x.reshape(-1)
    itemsizes = [jnp.dtype(x.dtype).itemsize, jnp.dtype(out_dtype).itemsize]
    if y_mode == "tensor":
        itemsizes.append(jnp.dtype(y_payload.dtype).itemsize)
    if n <= 4096:
        blk = n                                  # single full block (always legal)
    else:
        max_item = max(int(s) for s in itemsizes)
        blk = max(4096, (target_block_bytes // max_item) // 4096 * 4096)
        blk = min(blk, n // 4096 * 4096)
    grid = (pl.cdiv(n, blk),)
    spec = pl.BlockSpec((blk,), lambda i: (i,))
    out_sds = jax.ShapeDtypeStruct((n,), out_dtype)

    if y_mode == "const":
        out = pl.pallas_call(
            functools.partial(_add_const_kernel, const=y_payload),
            out_shape=out_sds, grid=grid,
            in_specs=[spec], out_specs=spec,
            compiler_params=cparams, input_output_aliases=io_alias,
        )(xf)
    elif y_mode == "smem":
        out = pl.pallas_call(
            _add_smem_scalar_kernel,
            out_shape=out_sds, grid=grid,
            in_specs=[spec, pl.BlockSpec(memory_space=pltpu.MemorySpace.SMEM)],
            out_specs=spec,
            compiler_params=cparams, input_output_aliases=io_alias,
        )(xf, y_payload)
    else:
        out = pl.pallas_call(
            _add_kernel,
            out_shape=out_sds, grid=grid,
            in_specs=[spec, spec], out_specs=spec,
            compiler_params=cparams, input_output_aliases=io_alias,
        )(xf, y_payload.reshape(-1))
    return out.reshape(out_shape)


if __name__ == "__main__":
    key = jax.random.PRNGKey(0)
    ks = jax.random.split(key, 8)

    # 1) Tensor + tensor, small NCHW activation shape.
    x = jax.random.normal(ks[0], (2, 4, 16, 16), dtype=jnp.float32)
    y = jax.random.normal(ks[1], (2, 4, 16, 16), dtype=jnp.float32)
    out = pallas_add(x, y)
    jax.block_until_ready(out)
    ref = x + y
    assert out.shape == ref.shape and out.dtype == ref.dtype
    assert jnp.allclose(out, ref, atol=1e-6, rtol=1e-6)

    # 2) Tensor + python float (Union[Tensor, float]; compile-time constant).
    out = pallas_add(x, 1.5)
    jax.block_until_ready(out)
    assert jnp.allclose(out, x + 1.5, atol=1e-6, rtol=1e-6)

    # 3) bf16 + bf16 (dtype-aware sublane tiling).
    xb, yb = x.astype(jnp.bfloat16), y.astype(jnp.bfloat16)
    out = pallas_add(xb, yb)
    jax.block_until_ready(out)
    refb = xb + yb
    assert out.dtype == refb.dtype
    assert jnp.allclose(out.astype(jnp.float32), refb.astype(jnp.float32),
                        atol=1e-2, rtol=1e-2)

    # 4) Mixed dtype bf16 + f32 -> promotion happens in-kernel, operands DMA native.
    out = pallas_add(xb, y)
    jax.block_until_ready(out)
    assert out.dtype == jnp.float32
    assert jnp.allclose(out, xb + y, atol=1e-6, rtol=1e-6)

    # 5) Larger array -> multi-step grid (>=2 steps for v7x megacore), partial block.
    x5 = jax.random.normal(ks[2], (2, 3, 128, 1000), dtype=jnp.float32)
    y5 = jax.random.normal(ks[3], (2, 3, 128, 1000), dtype=jnp.float32)
    out = pallas_add(x5, y5)
    jax.block_until_ready(out)
    assert jnp.allclose(out, x5 + y5, atol=1e-6, rtol=1e-6)

    # 6) numel % 128 != 0 -> ragged 1-D path with no pad / un-pad HBM passes.
    x6 = jax.random.normal(ks[4], (3, 5, 7), dtype=jnp.float32)
    y6 = jax.random.normal(ks[5], (3, 5, 7), dtype=jnp.float32)
    out = pallas_add(x6, y6)
    jax.block_until_ready(out)
    assert jnp.allclose(out, x6 + y6, atol=1e-6, rtol=1e-6)

    # 7) Size-1 tensor y -> SMEM scalar path (no broadcast materialization).
    out = pallas_add(x, jnp.array([0.25], dtype=jnp.float32))
    jax.block_until_ready(out)
    assert jnp.allclose(out, x + 0.25, atol=1e-6, rtol=1e-6)

    # 8) Per-channel bias y=(4,1,1) -> in-kernel row-bias broadcast (not materialized).
    y8 = jax.random.normal(ks[6], (4, 1, 1), dtype=jnp.float32)
    out = pallas_add(x, y8)
    jax.block_until_ready(out)
    assert jnp.allclose(out, x + y8, atol=1e-6, rtol=1e-6)

    # 9) Trailing bias y=(256,) -> resident (1, K) bias tile reused by every block.
    x9 = jax.random.normal(ks[7], (2, 8, 256), dtype=jnp.float32)
    y9 = jax.random.normal(ks[0], (256,), dtype=jnp.float32)
    out = pallas_add(x9, y9)
    jax.block_until_ready(out)
    assert jnp.allclose(out, x9 + y9, atol=1e-6, rtol=1e-6)

    # 10) Donation path: aliases x's buffer (same dtype, no wrapper copy).
    ref10 = x + y
    out = pallas_add(x + 0.0, y, donate_x=True)
    jax.block_until_ready(out)
    assert jnp.allclose(out, ref10, atol=1e-6, rtol=1e-6)

    print("KERNEL_OK")
</pallas_src>

<mosaic_0001>
module attributes {stable_mosaic.version = 11 : i64} {
  func.func @_add_kernel(%arg0: i32, %arg1: memref<1x2048xf32, #tpu.memory_space<vmem>>, %arg2: memref<1x2048xf32, #tpu.memory_space<vmem>>, %arg3: memref<1x2048xf32, #tpu.memory_space<vmem>>) attributes {dimension_semantics = [#tpu.dimension_semantics<parallel>], iteration_bounds = array<i64: 1>, scalar_prefetch = 0 : i64, scratch_operands = 0 : i64, tpu.core_type = #tpu.core_type<tc>, window_params = [{transform_indices = @transform_0, window_bounds = array<i64: 1, 2048>}, {transform_indices = @transform_1, window_bounds = array<i64: 1, 2048>}, {transform_indices = @transform_2, window_bounds = array<i64: 1, 2048>}]} {
    %c0 = arith.constant 0 : index
    %c0_0 = arith.constant 0 : index
    %0 = vector.load %arg1[%c0, %c0_0] : memref<1x2048xf32, #tpu.memory_space<vmem>>, vector<1x2048xf32>
    %c0_1 = arith.constant 0 : index
    %c0_2 = arith.constant 0 : index
    %1 = vector.load %arg2[%c0_1, %c0_2] : memref<1x2048xf32, #tpu.memory_space<vmem>>, vector<1x2048xf32>
    %2 = arith.addf %0, %1 : vector<1x2048xf32>
    %c0_3 = arith.constant 0 : index
    %c0_4 = arith.constant 0 : index
    %3 = vector.load %arg3[%c0_3, %c0_4] : memref<1x2048xf32, #tpu.memory_space<vmem>>, vector<1x2048xf32>
    tpu.vector_store %arg3[%c0_3, %c0_4], %2 {strides = array<i32>} : memref<1x2048xf32, #tpu.memory_space<vmem>>, vector<1x2048xf32>,
    return
  }
  func.func @transform_0(%arg0: i32) -> (i32, i32) {
    %c0_i32 = arith.constant 0 : i32
    %c0_i32_0 = arith.constant 0 : i32
    return %arg0, %c0_i32 : i32, i32
  }
  func.func @transform_1(%arg0: i32) -> (i32, i32) {
    %c0_i32 = arith.constant 0 : i32
    %c0_i32_0 = arith.constant 0 : i32
    return %arg0, %c0_i32 : i32, i32
  }
  func.func @transform_2(%arg0: i32) -> (i32, i32) {
    %c0_i32 = arith.constant 0 : i32
    %c0_i32_0 = arith.constant 0 : i32
    return %arg0, %c0_i32 : i32, i32
  }
}

</mosaic_0001>

<llo_original>
// kernel: tpu_custom_call.1
$region0: #{tpu_custom_call.1}
  #allocation0 [shape = 'u32[]', space=smem, size = 0x4, offset = 0x4, fixed_abs, tag = 'smem constant byte address 0x4 - core index']
  #allocation1 [shape = 'u32[144,128]{1,0:T(1,128)}', space=vmem, size = 0x12000, scoped, tag = 'internal scratch']
  %s0 = inlined_call_operand.hbm [shape: f32[1,2048], index: 0, kind: input, shape index: {}]
  %s1 = inlined_call_operand.hbm [shape: f32[1,2048], index: 1, kind: input, shape index: {}]
  %s2 = inlined_call_operand.hbm [shape: f32[1,2048], index: 2, kind: output, shape index: {}]
  %s3 = sld [smem:[#allocation0]]
  $region26: #{tpu_custom_call.1} parent=0
    _
  %s5 = ssub.s32 1, %s3
  %s6 = scalar_select 0, %s5, %s3
  $region1: #{tpu_custom_call.1} parent=0
    #allocation2 [shape = 'u8[8192]{0}', space=vmem, size = 0x2000, scoped, tag = 'input window, operand 0, single buffered']
    #allocation3 [shape = 's32[1]{0}', space=sflag, size = 0x4, scoped, tag = 'scoped memory for tpu_custom_call.1']
    #allocation4 [shape = 's32[1]{0}', space=sflag, size = 0x4, scoped, tag = 'scoped memory for tpu_custom_call.1']
    #allocation5 [shape = 'u8[8192]{0}', space=vmem, size = 0x2000, scoped, tag = 'input window, operand 1, single buffered']
    #allocation6 [shape = 's32[1]{0}', space=sflag, size = 0x4, scoped, tag = 'scoped memory for tpu_custom_call.1']
    #allocation7 [shape = 'u8[8192]{0}', space=vmem, size = 0x2000, scoped, tag = 'output window, operand 0, single buffered']
    %7 = vsyncpa [#allocation3], 0
    %8 = vsyncpa [#allocation6], 0
    %9 = vsyncpa [#allocation4], 0
    // Predicated region
    $region2: #{tpu_custom_call.1} parent=1 // pred_check
      _
    $region3: #{tpu_custom_call.1} parent=1 // pred_check_branch
      %11 = sbr.rel (0) target = $region5
    $region4: #{tpu_custom_call.1} parent=1 // pred_region
      %s13 = ssub.s32 256, 256
      %14 = vsyncadd [#allocation3], %s13
      %s16 = sshll.u32 [#allocation2], 4
      %s17 = int_to_ptr.vmem [resolvable:$true] %s16
      %19 = dma.hbm_to_vmem [thread:$0]  %s0, 256, %s17, [#allocation3]
    $region5: #{tpu_custom_call.1} parent=1 // pred_fallthru
      _
    // Predicated region
    $region6: #{tpu_custom_call.1} parent=1 // pred_check
      _
    $region7: #{tpu_custom_call.1} parent=1 // pred_check_branch
      %21 = sbr.rel (0) target = $region9
    $region8: #{tpu_custom_call.1} parent=1 // pred_region
      %s23 = ssub.s32 256, 256
      %24 = vsyncadd [#allocation6], %s23
      %s26 = sshll.u32 [#allocation5], 4
      %s27 = int_to_ptr.vmem [resolvable:$true] %s26
      %29 = dma.hbm_to_vmem [thread:$0]  %s1, 256, %s27, [#allocation6]
    $region9: #{tpu_custom_call.1} parent=1 // pred_fallthru
      _
    // Predicated region
    $region10: #{tpu_custom_call.1} parent=1 // pred_check
      _
    $region11: #{tpu_custom_call.1} parent=1 // pred_check_branch
      %31 = sbr.rel (0) target = $region13
    $region12: #{tpu_custom_call.1} parent=1 // pred_region
      %32 = dma.done [#allocation3], 256
    $region13: #{tpu_custom_call.1} parent=1 // pred_fallthru
      _
    // Predicated region
    $region14: #{tpu_custom_call.1} parent=1 // pred_check
      _
    $region15: #{tpu_custom_call.1} parent=1 // pred_check_branch
      %34 = sbr.rel (0) target = $region17
    $region16: #{tpu_custom_call.1} parent=1 // pred_region
      %35 = dma.done [#allocation6], 256
    $region17: #{tpu_custom_call.1} parent=1 // pred_fallthru
      _
    %v36 = vld [vmem:[#allocation2] sm:$0xff]
    %v37 = vld [vmem:[#allocation2 + $0x8] sm:$0xff]
    %v38 = vld [vmem:[#allocation5] sm:$0xff]
    %v39 = vld [vmem:[#allocation5 + $0x8] sm:$0xff]
    %v40 = vadd.f32 %v36, %v38
    %v41 = vadd.f32 %v37, %v39
    %42 = vst [vmem:[#allocation7] sm:$0xff] %v40
    %43 = vst [vmem:[#allocation7 + $0x8] sm:$0xff] %v41
    // Predicated region
    $region18: #{tpu_custom_call.1} parent=1 // pred_check
      _
    $region19: #{tpu_custom_call.1} parent=1 // pred_check_branch
      %45 = sbr.rel (0) target = $region21
    $region20: #{tpu_custom_call.1} parent=1 // pred_region
      %s47 = ssub.s32 256, 256
      %48 = vsyncadd [#allocation4], %s47
      %s50 = sshll.u32 [#allocation7], 4
      %s51 = int_to_ptr.vmem [resolvable:$true] %s50
      %53 = dma.vmem_to_hbm [thread:$0]  %s51, 256, %s2, [#allocation4]
    $region21: #{tpu_custom_call.1} parent=1 // pred_fallthru
      _
    // Predicated region
    $region22: #{tpu_custom_call.1} parent=1 // pred_check
      _
    $region23: #{tpu_custom_call.1} parent=1 // pred_check_branch
      %55 = sbr.rel (0) target = $region25
    $region24: #{tpu_custom_call.1} parent=1 // pred_region
      %56 = dma.done [#allocation4], 256
    $region25: #{tpu_custom_call.1} parent=1 // pred_fallthru
      _
    %57 = vsyncpa [#allocation3], 1
    %58 = vsyncpa [#allocation6], 1
    %59 = vsyncpa [#allocation4], 1

</llo_original>
